<compile_context>
chip_gen: v7x
topology: tpu7x:2x2x1
jax: 0.10.0
libtpu: 0.0.40
codegen_flags: <defaults>
</compile_context>

<pallas_src>
import jax
import jax.numpy as jnp
from jax.experimental import pallas as pl
from jax.experimental.pallas import tpu as pltpu


def discriminator_kernel(x_ref, w1_ref, b1_ref, w2_ref, b2_ref, w3_ref, b3_ref, o_ref):
    """One batch tile: everything stays in VMEM; matmuls hit the MXU in bf16
    with f32 accumulation."""
    x = x_ref[...]  # bf16 (padded)

    # Layer 1: Linear + LeakyReLU(0.2)
    h1 = jnp.dot(x, w1_ref[...], preferred_element_type=jnp.float32) + b1_ref[...]
    h1 = jnp.maximum(h1, 0.2 * h1)

    # Layer 2: Linear + LeakyReLU(0.2)
    h2 = jnp.dot(h1.astype(jnp.bfloat16), w2_ref[...],
                 preferred_element_type=jnp.float32) + b2_ref[...]
    h2 = jnp.maximum(h2, 0.2 * h2)

    # Layer 3: Linear + Sigmoid (numerically stable; exp + approx recip -> EUP)
    h3 = jnp.dot(h2.astype(jnp.bfloat16), w3_ref[...],
                 preferred_element_type=jnp.float32) + b3_ref[...]
    t = jnp.exp(-jnp.abs(h3))                      # in (0, 1], no inf possible
    inv = pl.reciprocal(1.0 + t, approx=True)      # 1 / (1 + exp(-|h|))
    o_ref[...] = jnp.where(h3 >= 0.0, inv, t * inv)


def _round_up(n, m):
    return ((n + m - 1) // m) * m


def _pad2d(a, rows, cols):
    r, c = a.shape
    return jnp.pad(a, ((0, rows - r), (0, cols - c)))


def discriminator_forward(x, w1, b1, w2, b2, w3, b3, *, batch_tile=256):
    """Wrapper: pad to MXU-friendly shapes, tile over batch, slice result back."""
    batch, in_size = x.shape
    hidden = w1.shape[1]
    out_size = w3.shape[1]

    IN_P = _round_up(in_size, 128)
    H_P = _round_up(hidden, 128)
    OUT_P = _round_up(out_size, 128)   # lane-dense output; real column sliced below

    # Batch tile: a multiple of 8; cap at `batch_tile` rows (keeps the resident
    # weights + 2x double-buffered x/out tiles well inside the v7x 32 MiB
    # scoped-VMEM default at scaled-up hidden sizes).
    B8 = _round_up(batch, 8)
    if B8 > batch_tile:
        TB = batch_tile
        B_P = _round_up(B8, TB)
    else:
        TB = B8
        B_P = B8

    # Zero-padded operands (zeros contribute nothing; garbage lanes never form).
    xp = _pad2d(x.astype(jnp.float32), B_P, IN_P).astype(jnp.bfloat16)
    w1p = _pad2d(w1, IN_P, H_P).astype(jnp.bfloat16)
    w2p = _pad2d(w2, H_P, H_P).astype(jnp.bfloat16)
    w3p = _pad2d(w3, H_P, OUT_P).astype(jnp.bfloat16)
    b1p = _pad2d(b1.reshape(1, -1).astype(jnp.float32), 1, H_P)
    b2p = _pad2d(b2.reshape(1, -1).astype(jnp.float32), 1, H_P)
    b3p = _pad2d(b3.reshape(1, -1).astype(jnp.float32), 1, OUT_P)

    grid = (B_P // TB,)

    out_padded = pl.pallas_call(
        discriminator_kernel,
        out_shape=jax.ShapeDtypeStruct((B_P, OUT_P), jnp.float32),
        grid=grid,
        in_specs=[
            pl.BlockSpec((TB, IN_P), lambda i: (i, 0)),     # x: streamed over batch
            pl.BlockSpec((IN_P, H_P), lambda i: (0, 0)),    # weights/biases resident
            pl.BlockSpec((1, H_P), lambda i: (0, 0)),
            pl.BlockSpec((H_P, H_P), lambda i: (0, 0)),
            pl.BlockSpec((1, H_P), lambda i: (0, 0)),
            pl.BlockSpec((H_P, OUT_P), lambda i: (0, 0)),
            pl.BlockSpec((1, OUT_P), lambda i: (0, 0)),
        ],
        out_specs=pl.BlockSpec((TB, OUT_P), lambda i: (i, 0)),
        compiler_params=pltpu.CompilerParams(dimension_semantics=("parallel",)),
    )(xp, w1p, b1p, w2p, b2p, w3p, b3p)

    return out_padded[:batch, :out_size]


def reference_forward(x, w1, b1, w2, b2, w3, b3):
    h1 = x @ w1 + b1
    h1 = jnp.where(h1 > 0, h1, 0.2 * h1)
    h2 = h1 @ w2 + b2
    h2 = jnp.where(h2 > 0, h2, 0.2 * h2)
    h3 = h2 @ w3 + b3
    return jax.nn.sigmoid(h3)


if __name__ == "__main__":
    # Small shapes consistent with Discriminator(input_size, hidden_size, output_size).
    # (At these toy sizes the kernel is launch-overhead bound; the tiling/bf16/grid
    # choices pay off at production batch/hidden sizes.)
    batch, input_size, hidden_size, output_size = 8, 16, 32, 1

    key = jax.random.PRNGKey(0)
    kx, k1, k2, k3, kb1, kb2, kb3 = jax.random.split(key, 7)

    x = jax.random.normal(kx, (batch, input_size), dtype=jnp.float32)

    # Parameters mirror nn.Linear, stored transposed as (in, out).
    w1 = 0.1 * jax.random.normal(k1, (input_size, hidden_size), dtype=jnp.float32)
    b1 = 0.1 * jax.random.normal(kb1, (hidden_size,), dtype=jnp.float32)
    w2 = 0.1 * jax.random.normal(k2, (hidden_size, hidden_size), dtype=jnp.float32)
    b2 = 0.1 * jax.random.normal(kb2, (hidden_size,), dtype=jnp.float32)
    w3 = 0.1 * jax.random.normal(k3, (hidden_size, output_size), dtype=jnp.float32)
    b3 = 0.1 * jax.random.normal(kb3, (output_size,), dtype=jnp.float32)

    out = discriminator_forward(x, w1, b1, w2, b2, w3, b3)
    out = jax.block_until_ready(out)

    ref = reference_forward(x, w1, b1, w2, b2, w3, b3)
    assert out.shape == (batch, output_size)
    # Tolerance covers bf16 MXU inputs + approx reciprocal vs f32 reference.
    assert jnp.allclose(out, ref, atol=2e-2, rtol=2e-2), "mismatch vs reference"

    print("KERNEL_OK")
</pallas_src>

<mosaic_0001>
module attributes {stable_mosaic.version = 11 : i64} {
  func.func @discriminator_kernel(%arg0: i32, %arg1: memref<8x128xbf16, #tpu.memory_space<vmem>>, %arg2: memref<128x128xbf16, #tpu.memory_space<vmem>>, %arg3: memref<1x128xf32, #tpu.memory_space<vmem>>, %arg4: memref<128x128xbf16, #tpu.memory_space<vmem>>, %arg5: memref<1x128xf32, #tpu.memory_space<vmem>>, %arg6: memref<128x128xbf16, #tpu.memory_space<vmem>>, %arg7: memref<1x128xf32, #tpu.memory_space<vmem>>, %arg8: memref<8x128xf32, #tpu.memory_space<vmem>>) attributes {dimension_semantics = [#tpu.dimension_semantics<parallel>], iteration_bounds = array<i64: 1>, scalar_prefetch = 0 : i64, scratch_operands = 0 : i64, tpu.core_type = #tpu.core_type<tc>, window_params = [{transform_indices = @transform_0, window_bounds = array<i64: 8, 128>}, {pipeline_mode = #tpu.pipeline_mode<synchronous>, transform_indices = @transform_1, window_bounds = array<i64: 128, 128>}, {pipeline_mode = #tpu.pipeline_mode<synchronous>, transform_indices = @transform_2, window_bounds = array<i64: 1, 128>}, {pipeline_mode = #tpu.pipeline_mode<synchronous>, transform_indices = @transform_3, window_bounds = array<i64: 128, 128>}, {pipeline_mode = #tpu.pipeline_mode<synchronous>, transform_indices = @transform_4, window_bounds = array<i64: 1, 128>}, {pipeline_mode = #tpu.pipeline_mode<synchronous>, transform_indices = @transform_5, window_bounds = array<i64: 128, 128>}, {pipeline_mode = #tpu.pipeline_mode<synchronous>, transform_indices = @transform_6, window_bounds = array<i64: 1, 128>}, {transform_indices = @transform_7, window_bounds = array<i64: 8, 128>}]} {
    %c0 = arith.constant 0 : index
    %c0_0 = arith.constant 0 : index
    %0 = vector.load %arg1[%c0, %c0_0] : memref<8x128xbf16, #tpu.memory_space<vmem>>, vector<8x128xbf16>
    %c0_1 = arith.constant 0 : index
    %c0_2 = arith.constant 0 : index
    %1 = vector.load %arg2[%c0_1, %c0_2] : memref<128x128xbf16, #tpu.memory_space<vmem>>, vector<128x128xbf16>
    %cst = arith.constant dense<0.000000e+00> : vector<8x128xf32>
    %2 = tpu.matmul %0, %1, %cst {dimension_numbers = #tpu.dot_dimension_numbers<[1], [0], [0], [1], [0, 0, 1, 1], [], []>} : vector<8x128xbf16>, vector<128x128xbf16>, vector<8x128xf32> -> vector<8x128xf32>
    %c0_3 = arith.constant 0 : index
    %c0_4 = arith.constant 0 : index
    %3 = vector.load %arg3[%c0_3, %c0_4] : memref<1x128xf32, #tpu.memory_space<vmem>>, vector<1x128xf32>
    %4 = vector.broadcast %3 : vector<1x128xf32> to vector<8x128xf32>
    %5 = arith.addf %2, %4 : vector<8x128xf32>
    %cst_5 = arith.constant 2.000000e-01 : f32
    %6 = vector.broadcast %cst_5 : f32 to vector<8x128xf32>
    %7 = arith.mulf %6, %5 : vector<8x128xf32>
    %8 = arith.maximumf %5, %7 : vector<8x128xf32>
    %9 = arith.truncf %8 : vector<8x128xf32> to vector<8x128xbf16>
    %c0_6 = arith.constant 0 : index
    %c0_7 = arith.constant 0 : index
    %10 = vector.load %arg4[%c0_6, %c0_7] : memref<128x128xbf16, #tpu.memory_space<vmem>>, vector<128x128xbf16>
    %cst_8 = arith.constant dense<0.000000e+00> : vector<8x128xf32>
    %11 = tpu.matmul %9, %10, %cst_8 {dimension_numbers = #tpu.dot_dimension_numbers<[1], [0], [0], [1], [0, 0, 1, 1], [], []>} : vector<8x128xbf16>, vector<128x128xbf16>, vector<8x128xf32> -> vector<8x128xf32>
    %c0_9 = arith.constant 0 : index
    %c0_10 = arith.constant 0 : index
    %12 = vector.load %arg5[%c0_9, %c0_10] : memref<1x128xf32, #tpu.memory_space<vmem>>, vector<1x128xf32>
    %13 = vector.broadcast %12 : vector<1x128xf32> to vector<8x128xf32>
    %14 = arith.addf %11, %13 : vector<8x128xf32>
    %cst_11 = arith.constant 2.000000e-01 : f32
    %15 = vector.broadcast %cst_11 : f32 to vector<8x128xf32>
    %16 = arith.mulf %15, %14 : vector<8x128xf32>
    %17 = arith.maximumf %14, %16 : vector<8x128xf32>
    %18 = arith.truncf %17 : vector<8x128xf32> to vector<8x128xbf16>
    %c0_12 = arith.constant 0 : index
    %c0_13 = arith.constant 0 : index
    %19 = vector.load %arg6[%c0_12, %c0_13] : memref<128x128xbf16, #tpu.memory_space<vmem>>, vector<128x128xbf16>
    %cst_14 = arith.constant dense<0.000000e+00> : vector<8x128xf32>
    %20 = tpu.matmul %18, %19, %cst_14 {dimension_numbers = #tpu.dot_dimension_numbers<[1], [0], [0], [1], [0, 0, 1, 1], [], []>} : vector<8x128xbf16>, vector<128x128xbf16>, vector<8x128xf32> -> vector<8x128xf32>
    %c0_15 = arith.constant 0 : index
    %c0_16 = arith.constant 0 : index
    %21 = vector.load %arg7[%c0_15, %c0_16] : memref<1x128xf32, #tpu.memory_space<vmem>>, vector<1x128xf32>
    %22 = vector.broadcast %21 : vector<1x128xf32> to vector<8x128xf32>
    %23 = arith.addf %20, %22 : vector<8x128xf32>
    %24 = math.absf %23 : vector<8x128xf32>
    %cst_17 = arith.constant 0.000000e+00 : f32
    %25 = vector.broadcast %cst_17 : f32 to vector<8x128xf32>
    %26 = arith.subf %25, %24 : vector<8x128xf32>
    %27 = math.exp %26 : vector<8x128xf32>
    %cst_18 = arith.constant 1.000000e+00 : f32
    %28 = vector.broadcast %cst_18 : f32 to vector<8x128xf32>
    %29 = arith.addf %28, %27 : vector<8x128xf32>
    %30 = tpu.reciprocal %29 {approx = true} : vector<8x128xf32> -> vector<8x128xf32>
    %cst_19 = arith.constant 0.000000e+00 : f32
    %31 = vector.broadcast %cst_19 : f32 to vector<8x128xf32>
    %32 = arith.cmpf oge, %23, %31 : vector<8x128xf32>
    %33 = arith.mulf %27, %30 : vector<8x128xf32>
    %34 = arith.select %32, %30, %33 : vector<8x128xi1>, vector<8x128xf32>
    %c0_20 = arith.constant 0 : index
    %c0_21 = arith.constant 0 : index
    %35 = vector.load %arg8[%c0_20, %c0_21] : memref<8x128xf32, #tpu.memory_space<vmem>>, vector<8x128xf32>
    tpu.vector_store %arg8[%c0_20, %c0_21], %34 {strides = array<i32>} : memref<8x128xf32, #tpu.memory_space<vmem>>, vector<8x128xf32>,
    return
  }
  func.func @transform_0(%arg0: i32) -> (i32, i32) {
    %c0_i32 = arith.constant 0 : i32
    %c0_i32_0 = arith.constant 0 : i32
    return %arg0, %c0_i32 : i32, i32
  }
  func.func @transform_1(%arg0: i32) -> (i32, i32) {
    %c0_i32 = arith.constant 0 : i32
    %c0_i32_0 = arith.constant 0 : i32
    %c0_i32_1 = arith.constant 0 : i32
    return %c0_i32, %c0_i32_0 : i32, i32
  }
  func.func @transform_2(%arg0: i32) -> (i32, i32) {
    %c0_i32 = arith.constant 0 : i32
    %c0_i32_0 = arith.constant 0 : i32
    %c0_i32_1 = arith.constant 0 : i32
    return %c0_i32, %c0_i32_0 : i32, i32
  }
  func.func @transform_3(%arg0: i32) -> (i32, i32) {
    %c0_i32 = arith.constant 0 : i32
    %c0_i32_0 = arith.constant 0 : i32
    %c0_i32_1 = arith.constant 0 : i32
    return %c0_i32, %c0_i32_0 : i32, i32
  }
  func.func @transform_4(%arg0: i32) -> (i32, i32) {
    %c0_i32 = arith.constant 0 : i32
    %c0_i32_0 = arith.constant 0 : i32
    %c0_i32_1 = arith.constant 0 : i32
    return %c0_i32, %c0_i32_0 : i32, i32
  }
  func.func @transform_5(%arg0: i32) -> (i32, i32) {
    %c0_i32 = arith.constant 0 : i32
    %c0_i32_0 = arith.constant 0 : i32
    %c0_i32_1 = arith.constant 0 : i32
    return %c0_i32, %c0_i32_0 : i32, i32
  }
  func.func @transform_6(%arg0: i32) -> (i32, i32) {
    %c0_i32 = arith.constant 0 : i32
    %c0_i32_0 = arith.constant 0 : i32
    %c0_i32_1 = arith.constant 0 : i32
    return %c0_i32, %c0_i32_0 : i32, i32
  }
  func.func @transform_7(%arg0: i32) -> (i32, i32) {
    %c0_i32 = arith.constant 0 : i32
    %c0_i32_0 = arith.constant 0 : i32
    return %arg0, %c0_i32 : i32, i32
  }
}

</mosaic_0001>

<llo_original>
// kernel: tpu_custom_call.1
$region0: #{tpu_custom_call.1}
  #allocation0 [shape = 'u32[]', space=smem, size = 0x4, offset = 0x4, fixed_abs, tag = 'smem constant byte address 0x4 - core index']
  #allocation1 [shape = 'u32[144,128]{1,0:T(1,128)}', space=vmem, size = 0x12000, scoped, tag = 'internal scratch']
  %s0 = inlined_call_operand.hbm [shape: bf16[8,128], index: 0, kind: input, shape index: {}]
  %s1 = inlined_call_operand.hbm [shape: bf16[128,128], index: 1, kind: input, shape index: {}]
  %s2 = inlined_call_operand.vmem [shape: f32[1,128], index: 2, kind: input, shape index: {}]
  %s3 = inlined_call_operand.hbm [shape: bf16[128,128], index: 3, kind: input, shape index: {}]
  %s4 = inlined_call_operand.vmem [shape: f32[1,128], index: 4, kind: input, shape index: {}]
  %s5 = inlined_call_operand.hbm [shape: bf16[128,128], index: 5, kind: input, shape index: {}]
  %s6 = inlined_call_operand.vmem [shape: f32[1,128], index: 6, kind: input, shape index: {}]
  %s7 = inlined_call_operand.hbm [shape: f32[8,128], index: 7, kind: output, shape index: {}]
  %s8 = sld [smem:[#allocation0]]
  $region54: #{tpu_custom_call.1} parent=0
    _
  %s10 = ssub.s32 1, %s8
  %s11 = scalar_select 0, %s10, %s8
  $region1: #{tpu_custom_call.1} parent=0
    #allocation2 [shape = 'u8[2048]{0}', space=vmem, size = 0x800, scoped, tag = 'input window, operand 0, single buffered']
    #allocation3 [shape = 's32[1]{0}', space=sflag, size = 0x4, scoped, tag = 'scoped memory for tpu_custom_call.1']
    #allocation4 [shape = 's32[1]{0}', space=sflag, size = 0x4, scoped, tag = 'scoped memory for tpu_custom_call.1']
    #allocation5 [shape = 'u8[32768]{0}', space=vmem, size = 0x8000, scoped, tag = 'input window, operand 1, single buffered']
    #allocation6 [shape = 's32[1]{0}', space=sflag, size = 0x4, scoped, tag = 'scoped memory for tpu_custom_call.1']
    #allocation7 [shape = 'u8[32768]{0}', space=vmem, size = 0x8000, scoped, tag = 'input window, operand 3, single buffered']
    #allocation8 [shape = 'u8[32768]{0}', space=vmem, size = 0x8000, scoped, tag = 'input window, operand 5, single buffered']
    #allocation9 [shape = 's32[1]{0}', space=sflag, size = 0x4, scoped, tag = 'scoped memory for tpu_custom_call.1']
    #allocation10 [shape = 'u8[4096]{0}', space=vmem, size = 0x1000, scoped, tag = 'output window, operand 0, single buffered']
    %12 = vsyncpa [#allocation3], 0
    %13 = vsyncpa [#allocation6], 0
    %14 = vsyncpa [#allocation9], 0
    %15 = vsyncpa [#allocation4], 0
    // Predicated region
    $region2: #{tpu_custom_call.1} parent=1 // pred_check
      _
    $region3: #{tpu_custom_call.1} parent=1 // pred_check_branch
      %17 = sbr.rel (0) target = $region5
    $region4: #{tpu_custom_call.1} parent=1 // pred_region
      %s19 = ssub.s32 64, 64
      %20 = vsyncadd [#allocation3], %s19
      %s22 = sshll.u32 [#allocation2], 4
      %s23 = int_to_ptr.vmem [resolvable:$true] %s22
      %25 = dma.hbm_to_vmem [thread:$0]  %s0, 64, %s23, [#allocation3]
    $region5: #{tpu_custom_call.1} parent=1 // pred_fallthru
      _
    // Predicated region
    $region6: #{tpu_custom_call.1} parent=1 // pred_check
      _
    $region7: #{tpu_custom_call.1} parent=1 // pred_check_branch
      %27 = sbr.rel (0) target = $region9
    $region8: #{tpu_custom_call.1} parent=1 // pred_region
      %s29 = ssub.s32 1024, 1024
      %30 = vsyncadd [#allocation6], %s29
      %s31 = sshll.u32 [#allocation5], 4
      %s32 = int_to_ptr.vmem [resolvable:$true] %s31
      %37 = dma.hbm_to_vmem [thread:$0]  %s1, 1024, %s32, [#allocation6], 64, 64, 4
    $region9: #{tpu_custom_call.1} parent=1 // pred_fallthru
      _
    // Predicated region
    $region10: #{tpu_custom_call.1} parent=1 // pred_check
      _
    $region11: #{tpu_custom_call.1} parent=1 // pred_check_branch
      %39 = sbr.rel (0) target = $region13
    $region12: #{tpu_custom_call.1} parent=1 // pred_region
      _
    $region13: #{tpu_custom_call.1} parent=1 // pred_fallthru
      _
    // Predicated region
    $region14: #{tpu_custom_call.1} parent=1 // pred_check
      _
    $region15: #{tpu_custom_call.1} parent=1 // pred_check_branch
      %41 = sbr.rel (0) target = $region17
    $region16: #{tpu_custom_call.1} parent=1 // pred_region
      %s43 = ssub.s32 1024, 1024
      %44 = vsyncadd [#allocation6], %s43
      %s45 = sshll.u32 [#allocation7], 4
      %s46 = int_to_ptr.vmem [resolvable:$true] %s45
      %51 = dma.hbm_to_vmem [thread:$0]  %s3, 1024, %s46, [#allocation6], 64, 64, 4
    $region17: #{tpu_custom_call.1} parent=1 // pred_fallthru
      _
    // Predicated region
    $region18: #{tpu_custom_call.1} parent=1 // pred_check
      _
    $region19: #{tpu_custom_call.1} parent=1 // pred_check_branch
      %53 = sbr.rel (0) target = $region21
    $region20: #{tpu_custom_call.1} parent=1 // pred_region
      _
    $region21: #{tpu_custom_call.1} parent=1 // pred_fallthru
      _
    // Predicated region
    $region22: #{tpu_custom_call.1} parent=1 // pred_check
      _
    $region23: #{tpu_custom_call.1} parent=1 // pred_check_branch
      %55 = sbr.rel (0) target = $region25
    $region24: #{tpu_custom_call.1} parent=1 // pred_region
      %s57 = ssub.s32 1024, 1024
      %58 = vsyncadd [#allocation9], %s57
      %s59 = sshll.u32 [#allocation8], 4
      %s60 = int_to_ptr.vmem [resolvable:$true] %s59
      %65 = dma.hbm_to_vmem [thread:$0]  %s5, 1024, %s60, [#allocation9], 64, 64, 4
    $region25: #{tpu_custom_call.1} parent=1 // pred_fallthru
      _
    // Predicated region
    $region26: #{tpu_custom_call.1} parent=1 // pred_check
      _
    $region27: #{tpu_custom_call.1} parent=1 // pred_check_branch
      %67 = sbr.rel (0) target = $region29
    $region28: #{tpu_custom_call.1} parent=1 // pred_region
      _
    $region29: #{tpu_custom_call.1} parent=1 // pred_fallthru
      _
    // Predicated region
    $region30: #{tpu_custom_call.1} parent=1 // pred_check
      _
    $region31: #{tpu_custom_call.1} parent=1 // pred_check_branch
      %69 = sbr.rel (0) target = $region33
    $region32: #{tpu_custom_call.1} parent=1 // pred_region
      %70 = dma.done [#allocation3], 64
    $region33: #{tpu_custom_call.1} parent=1 // pred_fallthru
      _
    // Predicated region
    $region34: #{tpu_custom_call.1} parent=1 // pred_check
      _
    $region35: #{tpu_custom_call.1} parent=1 // pred_check_branch
      %72 = sbr.rel (0) target = $region37
    $region36: #{tpu_custom_call.1} parent=1 // pred_region
      %73 = dma.done [#allocation6], 1024
    $region37: #{tpu_custom_call.1} parent=1 // pred_fallthru
      _
    // Predicated region
    $region38: #{tpu_custom_call.1} parent=1 // pred_check
      _
    $region39: #{tpu_custom_call.1} parent=1 // pred_check_branch
      %75 = sbr.rel (0) target = $region41
    $region40: #{tpu_custom_call.1} parent=1 // pred_region
      %76 = dma.done [#allocation6], 1024
    $region41: #{tpu_custom_call.1} parent=1 // pred_fallthru
      _
    // Predicated region
    $region42: #{tpu_custom_call.1} parent=1 // pred_check
      _
    $region43: #{tpu_custom_call.1} parent=1 // pred_check_branch
      %78 = sbr.rel (0) target = $region45
    $region44: #{tpu_custom_call.1} parent=1 // pred_region
      %79 = dma.done [#allocation9], 1024
    $region45: #{tpu_custom_call.1} parent=1 // pred_fallthru
      _
    %v81 = vld [vmem:[#allocation2] sm:$0xf]
    %v82 = vld [vmem:[#allocation5] sm:$0xf]
    %v83 = vld [vmem:[#allocation5 + $0x4] sm:$0xf]
    %v84 = vld [vmem:[#allocation5 + $0x8] sm:$0xf]
    %v85 = vld [vmem:[#allocation5 + $0xc] sm:$0xf]
    %v86 = vld [vmem:[#allocation5 + $0x10] sm:$0xf]
    %v87 = vld [vmem:[#allocation5 + $0x14] sm:$0xf]
    %v88 = vld [vmem:[#allocation5 + $0x18] sm:$0xf]
    %v89 = vld [vmem:[#allocation5 + $0x1c] sm:$0xf]
    %v90 = vld [vmem:[#allocation5 + $0x20] sm:$0xf]
    %v91 = vld [vmem:[#allocation5 + $0x24] sm:$0xf]
    %v92 = vld [vmem:[#allocation5 + $0x28] sm:$0xf]
    %v93 = vld [vmem:[#allocation5 + $0x2c] sm:$0xf]
    %v94 = vld [vmem:[#allocation5 + $0x30] sm:$0xf]
    %v95 = vld [vmem:[#allocation5 + $0x34] sm:$0xf]
    %v96 = vld [vmem:[#allocation5 + $0x38] sm:$0xf]
    %v97 = vld [vmem:[#allocation5 + $0x3c] sm:$0xf]
    %v98 = vld [vmem:[%s2] sm:$0x1]
    %v100 = vlaneseq
    %v101 = vshrl.u32 %v100, 7
    %v102 = vsub.s32 0, %v101
    %v103 = vrot.slane %v98, %v102
    %v121 = vunpack.c.l.b16 %v82
    %v122 = vunpack.c.l.b16 %v83
    %v123 = vunpack.c.l.b16 %v84
    %v124 = vunpack.c.l.b16 %v85
    %v125 = vunpack.c.l.b16 %v86
    %v126 = vunpack.c.l.b16 %v87
    %v127 = vunpack.c.l.b16 %v88
    %v128 = vunpack.c.l.b16 %v89
    %v129 = vunpack.c.l.b16 %v90
    %v130 = vunpack.c.l.b16 %v91
    %v131 = vunpack.c.l.b16 %v92
    %v132 = vunpack.c.l.b16 %v93
    %v133 = vunpack.c.l.b16 %v94
    %v134 = vunpack.c.l.b16 %v95
    %v135 = vunpack.c.l.b16 %v96
    %v136 = vunpack.c.l.b16 %v97
    %v137 = vpack.c.b16 %v122, %v121
    %v138 = vpack.c.b16 %v124, %v123
    %v139 = vpack.c.b16 %v126, %v125
    %v140 = vpack.c.b16 %v128, %v127
    %v141 = vpack.c.b16 %v130, %v129
    %v142 = vpack.c.b16 %v132, %v131
    %v143 = vpack.c.b16 %v134, %v133
    %v144 = vpack.c.b16 %v136, %v135
    %153 = vmatprep.subr.bf16.mxu0 0
    %154 = vmatpush1.bf16.msra.mxu0 %v137
    %155 = vmatprep.subr.bf16.mxu0 0
    %156 = vmatpush1.bf16.msra.mxu0 %v138
    %157 = vmatprep.subr.bf16.mxu0 0
    %158 = vmatpush1.bf16.msra.mxu0 %v139
    %159 = vmatprep.subr.bf16.mxu0 0
    %160 = vmatpush1.bf16.msra.mxu0 %v140
    %161 = vmatprep.subr.bf16.mxu0 0
    %162 = vmatpush1.bf16.msra.mxu0 %v141
    %163 = vmatprep.subr.bf16.mxu0 0
    %164 = vmatpush1.bf16.msra.mxu0 %v142
    %165 = vmatprep.subr.bf16.mxu0 0
    %166 = vmatpush1.bf16.msra.mxu0 %v143
    %167 = vmatprep.subr.bf16.mxu0 0
    %168 = vmatpush1.bf16.msra.mxu0 %v144
    %169 = vmatprep.subr.bf16.mxu0 0
    %170 = vmatpush1.bf16.msra.mxu0 0
    %171 = vmatprep.subr.bf16.mxu0 0
    %172 = vmatpush1.bf16.msra.mxu0 0
    %173 = vmatprep.subr.bf16.mxu0 0
    %174 = vmatpush1.bf16.msra.mxu0 0
    %175 = vmatprep.subr.bf16.mxu0 0
    %176 = vmatpush1.bf16.msra.mxu0 0
    %177 = vmatprep.subr.bf16.mxu0 0
    %178 = vmatpush1.bf16.msra.mxu0 0
    %179 = vmatprep.subr.bf16.mxu0 0
    %180 = vmatpush1.bf16.msra.mxu0 0
    %181 = vmatprep.subr.bf16.mxu0 0
    %182 = vmatpush1.bf16.msra.mxu0 0
    %183 = vmatprep.subr.bf16.mxu0 0
    %184 = vmatpush1.bf16.msra.mxu0 0
    %185 = vmatprep.mubr.bf16.mxu0 0
    %186 = vmatmul.mubr.bf16.gmra.mrb[0].mxu0 %v81
    %v187 = vpop.f32.mrb[0].mxu0
    %v188 = vadd.f32 %v103, %v187
    %v189 = vpop.f32.mrb[0].mxu0
    %v190 = vpop.f32.mrb[0].mxu0
    %v191 = vpop.f32.mrb[0].mxu0
    %192 = vdwg.mxu0
    %v193 = vmul.f32 %v188, 0.2
    %v194 = vmax.f32 %v188, %v193
    %v195 = vpack.c.bf16 %v194, %v194
    %v196 = vld [vmem:[#allocation7] sm:$0xf]
    %v197 = vld [vmem:[#allocation7 + $0x4] sm:$0xf]
    %v198 = vld [vmem:[#allocation7 + $0x8] sm:$0xf]
    %v199 = vld [vmem:[#allocation7 + $0xc] sm:$0xf]
    %v200 = vld [vmem:[#allocation7 + $0x10] sm:$0xf]
    %v201 = vld [vmem:[#allocation7 + $0x14] sm:$0xf]
    %v202 = vld [vmem:[#allocation7 + $0x18] sm:$0xf]
    %v203 = vld [vmem:[#allocation7 + $0x1c] sm:$0xf]
    %v204 = vld [vmem:[#allocation7 + $0x20] sm:$0xf]
    %v205 = vld [vmem:[#allocation7 + $0x24] sm:$0xf]
    %v206 = vld [vmem:[#allocation7 + $0x28] sm:$0xf]
    %v207 = vld [vmem:[#allocation7 + $0x2c] sm:$0xf]
    %v208 = vld [vmem:[#allocation7 + $0x30] sm:$0xf]
    %v209 = vld [vmem:[#allocation7 + $0x34] sm:$0xf]
    %v210 = vld [vmem:[#allocation7 + $0x38] sm:$0xf]
    %v211 = vld [vmem:[#allocation7 + $0x3c] sm:$0xf]
    %v212 = vld [vmem:[%s4] sm:$0x1]
    %v214 = vlaneseq
    %v215 = vshrl.u32 %v214, 7
    %v216 = vsub.s32 0, %v215
    %v217 = vrot.slane %v212, %v216
    %v235 = vunpack.c.l.b16 %v196
    %v236 = vunpack.c.l.b16 %v197
    %v237 = vunpack.c.l.b16 %v198
    %v238 = vunpack.c.l.b16 %v199
    %v239 = vunpack.c.l.b16 %v200
    %v240 = vunpack.c.l.b16 %v201
    %v241 = vunpack.c.l.b16 %v202
    %v242 = vunpack.c.l.b16 %v203
    %v243 = vunpack.c.l.b16 %v204
    %v244 = vunpack.c.l.b16 %v205
    %v245 = vunpack.c.l.b16 %v206
    %v246 = vunpack.c.l.b16 %v207
    %v247 = vunpack.c.l.b16 %v208
    %v248 = vunpack.c.l.b16 %v209
    %v249 = vunpack.c.l.b16 %v210
    %v250 = vunpack.c.l.b16 %v211
    %v251 = vpack.c.b16 %v236, %v235
    %v252 = vpack.c.b16 %v238, %v237
    %v253 = vpack.c.b16 %v240, %v239
    %v254 = vpack.c.b16 %v242, %v241
    %v255 = vpack.c.b16 %v244, %v243
    %v256 = vpack.c.b16 %v246, %v245
    %v257 = vpack.c.b16 %v248, %v247
    %v258 = vpack.c.b16 %v250, %v249
    %267 = vmatprep.subr.bf16.mxu0 0
    %268 = vmatpush1.bf16.msra.mxu0 %v251
    %269 = vmatprep.subr.bf16.mxu0 0
    %270 = vmatpush1.bf16.msra.mxu0 %v252
    %271 = vmatprep.subr.bf16.mxu0 0
    %272 = vmatpush1.bf16.msra.mxu0 %v253
    %273 = vmatprep.subr.bf16.mxu0 0
    %274 = vmatpush1.bf16.msra.mxu0 %v254
    %275 = vmatprep.subr.bf16.mxu0 0
    %276 = vmatpush1.bf16.msra.mxu0 %v255
    %277 = vmatprep.subr.bf16.mxu0 0
    %278 = vmatpush1.bf16.msra.mxu0 %v256
    %279 = vmatprep.subr.bf16.mxu0 0
    %280 = vmatpush1.bf16.msra.mxu0 %v257
    %281 = vmatprep.subr.bf16.mxu0 0
    %282 = vmatpush1.bf16.msra.mxu0 %v258
    %283 = vmatprep.subr.bf16.mxu0 0
    %284 = vmatpush1.bf16.msra.mxu0 0
    %285 = vmatprep.subr.bf16.mxu0 0
    %286 = vmatpush1.bf16.msra.mxu0 0
    %287 = vmatprep.subr.bf16.mxu0 0
    %288 = vmatpush1.bf16.msra.mxu0 0
    %289 = vmatprep.subr.bf16.mxu0 0
    %290 = vmatpush1.bf16.msra.mxu0 0
    %291 = vmatprep.subr.bf16.mxu0 0
    %292 = vmatpush1.bf16.msra.mxu0 0
    %293 = vmatprep.subr.bf16.mxu0 0
    %294 = vmatpush1.bf16.msra.mxu0 0
    %295 = vmatprep.subr.bf16.mxu0 0
    %296 = vmatpush1.bf16.msra.mxu0 0
    %297 = vmatprep.subr.bf16.mxu0 0
    %298 = vmatpush1.bf16.msra.mxu0 0
    %299 = vmatprep.mubr.bf16.mxu0 0
    %300 = vmatmul.mubr.bf16.gmra.mrb[0].mxu0 %v195
    %v301 = vpop.f32.mrb[0].mxu0
    %v302 = vadd.f32 %v217, %v301
    %v303 = vpop.f32.mrb[0].mxu0
    %v304 = vpop.f32.mrb[0].mxu0
    %v305 = vpop.f32.mrb[0].mxu0
    %306 = vdwg.mxu0
    %v307 = vmul.f32 %v302, 0.2
    %v308 = vmax.f32 %v302, %v307
    %v309 = vpack.c.bf16 %v308, %v308
    %v310 = vld [vmem:[#allocation8] sm:$0xf]
    %v311 = vld [vmem:[#allocation8 + $0x4] sm:$0xf]
    %v312 = vld [vmem:[#allocation8 + $0x8] sm:$0xf]
    %v313 = vld [vmem:[#allocation8 + $0xc] sm:$0xf]
    %v314 = vld [vmem:[#allocation8 + $0x10] sm:$0xf]
    %v315 = vld [vmem:[#allocation8 + $0x14] sm:$0xf]
    %v316 = vld [vmem:[#allocation8 + $0x18] sm:$0xf]
    %v317 = vld [vmem:[#allocation8 + $0x1c] sm:$0xf]
    %v318 = vld [vmem:[#allocation8 + $0x20] sm:$0xf]
    %v319 = vld [vmem:[#allocation8 + $0x24] sm:$0xf]
    %v320 = vld [vmem:[#allocation8 + $0x28] sm:$0xf]
    %v321 = vld [vmem:[#allocation8 + $0x2c] sm:$0xf]
    %v322 = vld [vmem:[#allocation8 + $0x30] sm:$0xf]
    %v323 = vld [vmem:[#allocation8 + $0x34] sm:$0xf]
    %v324 = vld [vmem:[#allocation8 + $0x38] sm:$0xf]
    %v325 = vld [vmem:[#allocation8 + $0x3c] sm:$0xf]
    %v326 = vld [vmem:[%s6] sm:$0x1]
    %v328 = vlaneseq
    %v329 = vshrl.u32 %v328, 7
    %v330 = vsub.s32 0, %v329
    %v331 = vrot.slane %v326, %v330
    %v349 = vunpack.c.l.b16 %v310
    %v350 = vunpack.c.l.b16 %v311
    %v351 = vunpack.c.l.b16 %v312
    %v352 = vunpack.c.l.b16 %v313
    %v353 = vunpack.c.l.b16 %v314
    %v354 = vunpack.c.l.b16 %v315
    %v355 = vunpack.c.l.b16 %v316
    %v356 = vunpack.c.l.b16 %v317
    %v357 = vunpack.c.l.b16 %v318
    %v358 = vunpack.c.l.b16 %v319
    %v359 = vunpack.c.l.b16 %v320
    %v360 = vunpack.c.l.b16 %v321
    %v361 = vunpack.c.l.b16 %v322
    %v362 = vunpack.c.l.b16 %v323
    %v363 = vunpack.c.l.b16 %v324
    %v364 = vunpack.c.l.b16 %v325
    %v365 = vpack.c.b16 %v350, %v349
    %v366 = vpack.c.b16 %v352, %v351
    %v367 = vpack.c.b16 %v354, %v353
    %v368 = vpack.c.b16 %v356, %v355
    %v369 = vpack.c.b16 %v358, %v357
    %v370 = vpack.c.b16 %v360, %v359
    %v371 = vpack.c.b16 %v362, %v361
    %v372 = vpack.c.b16 %v364, %v363
    %381 = vmatprep.subr.bf16.mxu0 0
    %382 = vmatpush1.bf16.msra.mxu0 %v365
    %383 = vmatprep.subr.bf16.mxu0 0
    %384 = vmatpush1.bf16.msra.mxu0 %v366
    %385 = vmatprep.subr.bf16.mxu0 0
    %386 = vmatpush1.bf16.msra.mxu0 %v367
    %387 = vmatprep.subr.bf16.mxu0 0
    %388 = vmatpush1.bf16.msra.mxu0 %v368
    %389 = vmatprep.subr.bf16.mxu0 0
    %390 = vmatpush1.bf16.msra.mxu0 %v369
    %391 = vmatprep.subr.bf16.mxu0 0
    %392 = vmatpush1.bf16.msra.mxu0 %v370
    %393 = vmatprep.subr.bf16.mxu0 0
    %394 = vmatpush1.bf16.msra.mxu0 %v371
    %395 = vmatprep.subr.bf16.mxu0 0
    %396 = vmatpush1.bf16.msra.mxu0 %v372
    %397 = vmatprep.subr.bf16.mxu0 0
    %398 = vmatpush1.bf16.msra.mxu0 0
    %399 = vmatprep.subr.bf16.mxu0 0
    %400 = vmatpush1.bf16.msra.mxu0 0
    %401 = vmatprep.subr.bf16.mxu0 0
    %402 = vmatpush1.bf16.msra.mxu0 0
    %403 = vmatprep.subr.bf16.mxu0 0
    %404 = vmatpush1.bf16.msra.mxu0 0
    %405 = vmatprep.subr.bf16.mxu0 0
    %406 = vmatpush1.bf16.msra.mxu0 0
    %407 = vmatprep.subr.bf16.mxu0 0
    %408 = vmatpush1.bf16.msra.mxu0 0
    %409 = vmatprep.subr.bf16.mxu0 0
    %410 = vmatpush1.bf16.msra.mxu0 0
    %411 = vmatprep.subr.bf16.mxu0 0
    %412 = vmatpush1.bf16.msra.mxu0 0
    %413 = vmatprep.mubr.bf16.mxu0 0
    %414 = vmatmul.mubr.bf16.gmra.mrb[0].mxu0 %v309
    %v415 = vpop.f32.mrb[0].mxu0
    %v416 = vadd.f32 %v331, %v415
    %v417 = vpop.f32.mrb[0].mxu0
    %v418 = vpop.f32.mrb[0].mxu0
    %v419 = vpop.f32.mrb[0].mxu0
    %420 = vdwg.mxu0
    %v421 = vand.u32 2147483647, %v416
    %v422 = vsub.f32 0.0, %v421
    %v423 = vmul.f32 %v422, 1.442695
    %v424 = vpow.pop %v423
    %v425 = vadd.f32 %v424, 1.0
    %v426 = vrcp.pop %v425
    %vm427 = vcmp.ge.f32.partialorder %v416, 0.0
    %v428 = vmul.f32 %v424, %v426
    %v429 = vsel %vm427, %v426, %v428
    %430 = vst [vmem:[#allocation10] sm:$0xff] %v429
    // Predicated region
    $region46: #{tpu_custom_call.1} parent=1 // pred_check
      _
    $region47: #{tpu_custom_call.1} parent=1 // pred_check_branch
      %432 = sbr.rel (0) target = $region49
    $region48: #{tpu_custom_call.1} parent=1 // pred_region
      %s434 = ssub.s32 128, 128
      %435 = vsyncadd [#allocation4], %s434
      %s437 = sshll.u32 [#allocation10], 4
      %s438 = int_to_ptr.vmem [resolvable:$true] %s437
      %440 = dma.vmem_to_hbm [thread:$0]  %s438, 128, %s7, [#allocation4]
    $region49: #{tpu_custom_call.1} parent=1 // pred_fallthru
      _
    // Predicated region
    $region50: #{tpu_custom_call.1} parent=1 // pred_check
      _
    $region51: #{tpu_custom_call.1} parent=1 // pred_check_branch
      %442 = sbr.rel (0) target = $region53
    $region52: #{tpu_custom_call.1} parent=1 // pred_region
      %443 = dma.done [#allocation4], 128
    $region53: #{tpu_custom_call.1} parent=1 // pred_fallthru
      _
    %444 = vsyncpa [#allocation3], 1
    %445 = vsyncpa [#allocation6], 1
    %446 = vsyncpa [#allocation9], 1
    %447 = vsyncpa [#allocation4], 1

</llo_original>
